<compile_context>
chip_gen: v5e
topology: v5e:2x2
jax: 0.10.0
libtpu: 0.0.40
codegen_flags: <defaults>
</compile_context>

<pallas_src>
import functools

import jax
import jax.numpy as jnp
from jax.experimental import pallas as pl
from jax.experimental.pallas import tpu as pltpu

OUT_DIM = 2        # true output width of fc3 (what the kernel stores)
OUT_PAD = 128      # lane-dense padded width used only for the MXU RHS / bias

_TARGET_TILE_BYTES = 2 << 20   # ~2 MiB x-tile per grid step (amortizes step overhead)
_VMEM_BUDGET_BYTES = 20 << 20  # budget for double-buffered tiles + resident weight


def gan_image_kernel(x_ref, wc_ref, bc_ref, o_ref):
    # One MXU matmul per batch tile (f32 accumulate) + VPU bias add.
    acc = jnp.dot(x_ref[...], wc_ref[...], preferred_element_type=jnp.float32)
    acc = acc + bc_ref[...]
    # Store only the 2 real logits: narrow HBM writeback instead of 128-wide pad.
    o_ref[...] = acc[:, :OUT_DIM].astype(o_ref.dtype)


def prepare_params(params):
    """One-time weight preparation (NOT per forward call).

    - transpose PyTorch-style (out, in) weights to (in, out),
    - fold fc1/fc2/fc3 into a single affine map (exact: no activations),
    - pad the RHS/bias to 128 lanes so the matmul is lane-dense on the MXU.
    Fold is done with HIGHEST matmul precision to avoid any drift.
    """
    mm = functools.partial(jnp.matmul, precision=jax.lax.Precision.HIGHEST)

    w1 = params["fc1_w"].T          # (in_dim, 10)
    w2 = params["fc2_w"].T          # (10, 10)
    w3 = params["fc3_w"].T          # (10, 2)
    b1 = params["fc1_b"]            # (10,)
    b2 = params["fc2_b"]            # (10,)
    b3 = params["fc3_b"]            # (2,)

    wc = mm(mm(w1, w2), w3)                  # (in_dim, 2)
    bc = mm(mm(b1, w2) + b2, w3) + b3        # (2,)

    in_dim = wc.shape[0]
    wc_p = jnp.zeros((in_dim, OUT_PAD), jnp.float32).at[:, :OUT_DIM].set(wc)
    bc_p = jnp.zeros((1, OUT_PAD), jnp.float32).at[0, :OUT_DIM].set(bc)
    return wc_p, bc_p


def _pick_batch_tile(batch, in_dim):
    """Bytes-aware batch tile: big enough to hide per-step overhead, small
    enough that double-buffered tiles + the resident weight fit the VMEM budget."""
    row_bytes = in_dim * 4
    # Resident (and conservatively double-buffered) weight/bias:
    fixed = 2 * (in_dim * OUT_PAD * 4) + 2 * (OUT_PAD * 4)
    # Per-batch-row cost: double-buffered x tile + double-buffered out tile.
    per_row = 2 * row_bytes + 2 * OUT_DIM * 4
    cap = max(8, (_VMEM_BUDGET_BYTES - fixed) // per_row)

    tb = max(8, _TARGET_TILE_BYTES // row_bytes)
    tb = min(tb, cap)
    if tb >= batch:
        return int(batch)                      # single-grid-step fast path
    tb = max(8, (tb // 8) * 8)

    # Bias toward an even number of grid steps (v7x: two cores split the
    # parallel axis; avoid one core idling on a lone trailing tile).
    steps = -(-batch // tb)
    if steps > 1 and steps % 2 == 1:
        tb_even = max(8, ((-(-batch // (steps + 1)) + 7) // 8) * 8)
        if tb_even < batch and -(-batch // tb_even) % 2 == 0:
            tb = tb_even
    return int(tb)


@functools.partial(jax.jit, static_argnames=("tb",))
def gan_image_forward(x, wc_p, bc_p, *, tb=None):
    """x: (B, 2*roi_w*roi_h) float32. wc_p/bc_p from prepare_params()."""
    batch, in_dim = x.shape
    if tb is None:
        tb = _pick_batch_tile(batch, in_dim)
    else:
        tb = min(int(tb), batch)
        if tb < batch:
            tb = max(8, (tb // 8) * 8)

    grid = (pl.cdiv(batch, tb),)

    # Explicit VMEM ceiling: keeps the 2-deep pipeline alive on v5e's 16 MiB
    # scoped default and stays well inside v7x's 64 MiB physical VMEM.
    vmem_need = (2 * tb * in_dim * 4 + 2 * tb * OUT_DIM * 4
                 + 2 * in_dim * OUT_PAD * 4 + 2 * OUT_PAD * 4)
    vmem_limit = int(min(48 << 20, max(32 << 20, 2 * vmem_need)))

    return pl.pallas_call(
        gan_image_kernel,
        out_shape=jax.ShapeDtypeStruct((batch, OUT_DIM), x.dtype),
        grid=grid,
        in_specs=[
            # Stream the batch: automatic double-buffering overlaps the
            # HBM->VMEM DMA of tile i+1 with the matmul on tile i.
            pl.BlockSpec((tb, in_dim), lambda i: (i, 0)),
            # Folded weight / bias: constant block index -> VMEM-resident.
            pl.BlockSpec((in_dim, OUT_PAD), lambda i: (0, 0)),
            pl.BlockSpec((1, OUT_PAD), lambda i: (0, 0)),
        ],
        # Block last dim == full array dim (2) -> legal, no padding/slice pass.
        out_specs=pl.BlockSpec((tb, OUT_DIM), lambda i: (i, 0)),
        compiler_params=pltpu.CompilerParams(
            dimension_semantics=("parallel",),
            vmem_limit_bytes=vmem_limit,
        ),
        cost_estimate=pl.CostEstimate(
            flops=2 * batch * in_dim * OUT_PAD,
            transcendentals=0,
            bytes_accessed=4 * (batch * in_dim + batch * OUT_DIM + in_dim * OUT_PAD),
        ),
    )(x, wc_p, bc_p)


def init_params(key, roi_w, roi_h):
    in_dim = 2 * roi_w * roi_h
    ks = jax.random.split(key, 6)

    # Deterministic synthetic init (PyTorch-style uniform fan-in bound).
    def uni(k, shape, fan_in):
        bound = 1.0 / (fan_in ** 0.5)
        return jax.random.uniform(k, shape, jnp.float32, -bound, bound)

    return {
        "fc1_w": uni(ks[0], (10, in_dim), in_dim),
        "fc1_b": uni(ks[1], (10,), in_dim),
        "fc2_w": uni(ks[2], (10, 10), 10),
        "fc2_b": uni(ks[3], (10,), 10),
        "fc3_w": uni(ks[4], (2, 10), 10),
        "fc3_b": uni(ks[5], (2,), 10),
    }


def reference_forward(x, p):
    # Unfused PyTorch-style reference (validates both the fold and the kernel).
    hp = jax.lax.Precision.HIGHEST
    h = jnp.matmul(x, p["fc1_w"].T, precision=hp) + p["fc1_b"]
    h = jnp.matmul(h, p["fc2_w"].T, precision=hp) + p["fc2_b"]
    return jnp.matmul(h, p["fc3_w"].T, precision=hp) + p["fc3_b"]


if __name__ == "__main__":
    roi_w, roi_h = 8, 8              # -> input feature dim = 2 * 8 * 8 = 128
    batch = 64

    key = jax.random.PRNGKey(0)
    k_x, k_p = jax.random.split(key)
    params = init_params(k_p, roi_w, roi_h)
    x = jax.random.normal(k_x, (batch, 2 * roi_w * roi_h), jnp.float32)

    wc_p, bc_p = prepare_params(params)          # one-time weight prep

    # Auto tile: small batch -> single grid step (no pointless pipelining).
    out = jax.block_until_ready(gan_image_forward(x, wc_p, bc_p))
    # Forced small tile: exercises the multi-step double-buffered path too.
    out_multi = jax.block_until_ready(gan_image_forward(x, wc_p, bc_p, tb=16))

    ref = reference_forward(x, params)
    assert out.shape == (batch, OUT_DIM), out.shape
    assert jnp.allclose(out, ref, atol=5e-4, rtol=5e-4), (out, ref)
    assert jnp.allclose(out_multi, ref, atol=5e-4, rtol=5e-4), (out_multi, ref)
    print("KERNEL_OK")
</pallas_src>

<mosaic_0001>
module attributes {stable_mosaic.version = 11 : i64} {
  func.func @gan_image_kernel(%arg0: i32, %arg1: memref<64x128xf32, #tpu.memory_space<vmem>>, %arg2: memref<128x128xf32, #tpu.memory_space<vmem>>, %arg3: memref<1x128xf32, #tpu.memory_space<vmem>>, %arg4: memref<64x2xf32, #tpu.memory_space<vmem>>) attributes {dimension_semantics = [#tpu.dimension_semantics<parallel>], iteration_bounds = array<i64: 1>, scalar_prefetch = 0 : i64, scratch_operands = 0 : i64, tpu.core_type = #tpu.core_type<tc>, window_params = [{transform_indices = @transform_0, window_bounds = array<i64: 64, 128>}, {pipeline_mode = #tpu.pipeline_mode<synchronous>, transform_indices = @transform_1, window_bounds = array<i64: 128, 128>}, {pipeline_mode = #tpu.pipeline_mode<synchronous>, transform_indices = @transform_2, window_bounds = array<i64: 1, 128>}, {transform_indices = @transform_3, window_bounds = array<i64: 64, 2>}]} {
    %c0 = arith.constant 0 : index
    %c0_0 = arith.constant 0 : index
    %0 = vector.load %arg1[%c0, %c0_0] : memref<64x128xf32, #tpu.memory_space<vmem>>, vector<64x128xf32>
    %c0_1 = arith.constant 0 : index
    %c0_2 = arith.constant 0 : index
    %1 = vector.load %arg2[%c0_1, %c0_2] : memref<128x128xf32, #tpu.memory_space<vmem>>, vector<128x128xf32>
    %cst = arith.constant dense<0.000000e+00> : vector<64x128xf32>
    %2 = tpu.matmul %0, %1, %cst {dimension_numbers = #tpu.dot_dimension_numbers<[1], [0], [0], [1], [0, 0, 1, 1], [], []>} : vector<64x128xf32>, vector<128x128xf32>, vector<64x128xf32> -> vector<64x128xf32>
    %c0_3 = arith.constant 0 : index
    %c0_4 = arith.constant 0 : index
    %3 = vector.load %arg3[%c0_3, %c0_4] : memref<1x128xf32, #tpu.memory_space<vmem>>, vector<1x128xf32>
    %4 = vector.broadcast %3 : vector<1x128xf32> to vector<64x128xf32>
    %5 = arith.addf %2, %4 : vector<64x128xf32>
    %6 = vector.extract_strided_slice %5 {offsets = [0, 0], sizes = [64, 2], strides = [1, 1]} : vector<64x128xf32> to vector<64x2xf32>
    %c0_5 = arith.constant 0 : index
    %c0_6 = arith.constant 0 : index
    %7 = vector.load %arg4[%c0_5, %c0_6] : memref<64x2xf32, #tpu.memory_space<vmem>>, vector<64x2xf32>
    tpu.vector_store %arg4[%c0_5, %c0_6], %6 {strides = array<i32>} : memref<64x2xf32, #tpu.memory_space<vmem>>, vector<64x2xf32>,
    return
  }
  func.func @transform_0(%arg0: i32) -> (i32, i32) {
    %c0_i32 = arith.constant 0 : i32
    %c0_i32_0 = arith.constant 0 : i32
    return %arg0, %c0_i32 : i32, i32
  }
  func.func @transform_1(%arg0: i32) -> (i32, i32) {
    %c0_i32 = arith.constant 0 : i32
    %c0_i32_0 = arith.constant 0 : i32
    %c0_i32_1 = arith.constant 0 : i32
    return %c0_i32, %c0_i32_0 : i32, i32
  }
  func.func @transform_2(%arg0: i32) -> (i32, i32) {
    %c0_i32 = arith.constant 0 : i32
    %c0_i32_0 = arith.constant 0 : i32
    %c0_i32_1 = arith.constant 0 : i32
    return %c0_i32, %c0_i32_0 : i32, i32
  }
  func.func @transform_3(%arg0: i32) -> (i32, i32) {
    %c0_i32 = arith.constant 0 : i32
    %c0_i32_0 = arith.constant 0 : i32
    return %arg0, %c0_i32 : i32, i32
  }
}

</mosaic_0001>

<llo_original>
// kernel: gan_image_forward.1
$region0: #{gan_image_forward.1}
  #allocation0 [shape = 'u32[]', space=smem, size = 0x4, offset = 0x4, fixed_abs, tag = 'smem constant byte address 0x4 - core index']
  #allocation1 [shape = 'u32[72,128]{1,0:T(1,128)}', space=vmem, size = 0x9000, scoped, tag = 'internal scratch']
  %s0 = inlined_call_operand.hbm [shape: f32[64,128], index: 0, kind: input, shape index: {}]
  %s1 = inlined_call_operand.hbm [shape: f32[128,128], index: 1, kind: input, shape index: {}]
  %s2 = inlined_call_operand.vmem [shape: f32[1,128], index: 2, kind: input, shape index: {}]
  %s3 = inlined_call_operand.vmem [shape: f32[64,2], index: 3, kind: output, shape index: {}]
  %s4 = sld [smem:[#allocation0]]
  $region30: #{gan_image_forward.1} parent=0
    _
  %s6 = ssub.s32 1, %s4
  %s7 = scalar_select 0, %s6, %s4
  $region1: #{gan_image_forward.1} parent=0
    #allocation2 [shape = 'u8[32768]{0}', space=vmem, size = 0x8000, scoped, tag = 'input window, operand 0, single buffered']
    #allocation3 [shape = 's32[1]{0}', space=sflag, size = 0x4, scoped, tag = 'scoped memory for gan_image_forward.1']
    #allocation4 [shape = 'u8[65536]{0}', space=vmem, size = 0x10000, scoped, tag = 'input window, operand 1, single buffered']
    #allocation5 [shape = 's32[1]{0}', space=sflag, size = 0x4, scoped, tag = 'scoped memory for gan_image_forward.1']
    %8 = vsyncpa [#allocation3], 0
    %9 = vsyncpa [#allocation5], 0
    // Predicated region
    $region2: #{gan_image_forward.1} parent=1 // pred_check
      _
    $region3: #{gan_image_forward.1} parent=1 // pred_check_branch
      %11 = sbr.rel (0) target = $region5
    $region4: #{gan_image_forward.1} parent=1 // pred_region
      %13 = vsyncadd [#allocation3], 0
      %s14 = sshll.u32 %s0, 4
      %s15 = int_to_ptr.hbm [resolvable:$true] %s14
      %s16 = sshll.u32 [#allocation2], 4
      %s17 = int_to_ptr.vmem [resolvable:$true] %s16
      %22 = dma.hbm_to_vmem [thread:$0]  %s15, 1024, %s17, [#allocation3], 128, 128, 8
    $region5: #{gan_image_forward.1} parent=1 // pred_fallthru
      _
    // Predicated region
    $region6: #{gan_image_forward.1} parent=1 // pred_check
      _
    $region7: #{gan_image_forward.1} parent=1 // pred_check_branch
      %24 = sbr.rel (0) target = $region9
    $region8: #{gan_image_forward.1} parent=1 // pred_region
      %26 = vsyncadd [#allocation5], 0
      %s27 = sshll.u32 %s1, 4
      %s28 = int_to_ptr.hbm [resolvable:$true] %s27
      %s29 = sshll.u32 [#allocation4], 4
      %s30 = int_to_ptr.vmem [resolvable:$true] %s29
      %35 = dma.hbm_to_vmem [thread:$0]  %s28, 2048, %s30, [#allocation5], 128, 128, 8
    $region9: #{gan_image_forward.1} parent=1 // pred_fallthru
      _
    // Predicated region
    $region10: #{gan_image_forward.1} parent=1 // pred_check
      _
    $region11: #{gan_image_forward.1} parent=1 // pred_check_branch
      %37 = sbr.rel (0) target = $region13
    $region12: #{gan_image_forward.1} parent=1 // pred_region
      _
    $region13: #{gan_image_forward.1} parent=1 // pred_fallthru
      _
    // Predicated region
    $region14: #{gan_image_forward.1} parent=1 // pred_check
      _
    $region15: #{gan_image_forward.1} parent=1 // pred_check_branch
      %39 = sbr.rel (0) target = $region17
    $region16: #{gan_image_forward.1} parent=1 // pred_region
      %41 = dma.done [#allocation3], 1024
    $region17: #{gan_image_forward.1} parent=1 // pred_fallthru
      _
    // Predicated region
    $region18: #{gan_image_forward.1} parent=1 // pred_check
      _
    $region19: #{gan_image_forward.1} parent=1 // pred_check_branch
      %43 = sbr.rel (0) target = $region21
    $region20: #{gan_image_forward.1} parent=1 // pred_region
      %45 = dma.done [#allocation5], 2048
    $region21: #{gan_image_forward.1} parent=1 // pred_fallthru
      _
    %v46 = vld [vmem:[#allocation2] sm:$0xff]
    %v47 = vld [vmem:[#allocation2 + $0x8] sm:$0xff]
    %v48 = vld [vmem:[#allocation2 + $0x10] sm:$0xff]
    %v49 = vld [vmem:[#allocation2 + $0x18] sm:$0xff]
    %v50 = vld [vmem:[#allocation2 + $0x20] sm:$0xff]
    %v51 = vld [vmem:[#allocation2 + $0x28] sm:$0xff]
    %v52 = vld [vmem:[#allocation2 + $0x30] sm:$0xff]
    %v53 = vld [vmem:[#allocation2 + $0x38] sm:$0xff]
    %v54 = vld [vmem:[#allocation4] sm:$0xff]
    %v55 = vld [vmem:[#allocation4 + $0x8] sm:$0xff]
    %v56 = vld [vmem:[#allocation4 + $0x10] sm:$0xff]
    %v57 = vld [vmem:[#allocation4 + $0x18] sm:$0xff]
    %v58 = vld [vmem:[#allocation4 + $0x20] sm:$0xff]
    %v59 = vld [vmem:[#allocation4 + $0x28] sm:$0xff]
    %v60 = vld [vmem:[#allocation4 + $0x30] sm:$0xff]
    %v61 = vld [vmem:[#allocation4 + $0x38] sm:$0xff]
    %v62 = vld [vmem:[#allocation4 + $0x40] sm:$0xff]
    %v63 = vld [vmem:[#allocation4 + $0x48] sm:$0xff]
    %v64 = vld [vmem:[#allocation4 + $0x50] sm:$0xff]
    %v65 = vld [vmem:[#allocation4 + $0x58] sm:$0xff]
    %v66 = vld [vmem:[#allocation4 + $0x60] sm:$0xff]
    %v67 = vld [vmem:[#allocation4 + $0x68] sm:$0xff]
    %v68 = vld [vmem:[#allocation4 + $0x70] sm:$0xff]
    %v69 = vld [vmem:[#allocation4 + $0x78] sm:$0xff]
    %v70 = vld [vmem:[%s2] sm:$0x1]
    %v72 = vperm.slane %v70, 0
    %74 = vmatpush.msra.mxu0 %v69
    %75 = vmatpush.msra.mxu0 %v68
    %76 = vmatpush.msra.mxu0 %v67
    %77 = vmatpush.msra.mxu0 %v66
    %78 = vmatpush.msra.mxu0 %v65
    %79 = vmatpush.msra.mxu0 %v64
    %80 = vmatpush.msra.mxu0 %v63
    %81 = vmatpush.msra.mxu0 %v62
    %82 = vmatpush.msra.mxu0 %v61
    %83 = vmatpush.msra.mxu0 %v60
    %84 = vmatpush.msra.mxu0 %v59
    %85 = vmatpush.msra.mxu0 %v58
    %86 = vmatpush.msra.mxu0 %v57
    %87 = vmatpush.msra.mxu0 %v56
    %88 = vmatpush.msra.mxu0 %v55
    %89 = vmatpush.msra.mxu0 %v54
    %90 = vmatmul.f32.gmra.mxu0 %v46
    %v91 = vpop.f32.mrf.mxu0
    %v92 = vadd.f32 %v72, %v91
    %93 = vmatmul.f32.gmra.mxu0 %v47
    %v94 = vpop.f32.mrf.mxu0
    %v95 = vadd.f32 %v72, %v94
    %96 = vmatmul.f32.gmra.mxu0 %v48
    %v97 = vpop.f32.mrf.mxu0
    %v98 = vadd.f32 %v72, %v97
    %99 = vmatmul.f32.gmra.mxu0 %v49
    %v100 = vpop.f32.mrf.mxu0
    %v101 = vadd.f32 %v72, %v100
    %102 = vmatmul.f32.gmra.mxu0 %v50
    %v103 = vpop.f32.mrf.mxu0
    %v104 = vadd.f32 %v72, %v103
    %105 = vmatmul.f32.gmra.mxu0 %v51
    %v106 = vpop.f32.mrf.mxu0
    %v107 = vadd.f32 %v72, %v106
    %108 = vmatmul.f32.gmra.mxu0 %v52
    %v109 = vpop.f32.mrf.mxu0
    %v110 = vadd.f32 %v72, %v109
    %111 = vmatmul.f32.gmra.mxu0 %v53
    %v112 = vpop.f32.mrf.mxu0
    %v113 = vadd.f32 %v72, %v112
    %114 = vdwg.mxu0
    %vm115 = vcmask 15360
    %116 = vst.msk [vmem:[%s3] sm:$0xff] %vm115, %v92
    %117 = vst.msk [vmem:[%s3 + $0x8] sm:$0xff] %vm115, %v95
    %118 = vst.msk [vmem:[%s3 + $0x10] sm:$0xff] %vm115, %v98
    %119 = vst.msk [vmem:[%s3 + $0x18] sm:$0xff] %vm115, %v101
    %120 = vst.msk [vmem:[%s3 + $0x20] sm:$0xff] %vm115, %v104
    %121 = vst.msk [vmem:[%s3 + $0x28] sm:$0xff] %vm115, %v107
    %122 = vst.msk [vmem:[%s3 + $0x30] sm:$0xff] %vm115, %v110
    %123 = vst.msk [vmem:[%s3 + $0x38] sm:$0xff] %vm115, %v113
    // Predicated region
    $region22: #{gan_image_forward.1} parent=1 // pred_check
      _
    $region23: #{gan_image_forward.1} parent=1 // pred_check_branch
      %125 = sbr.rel (0) target = $region25
    $region24: #{gan_image_forward.1} parent=1 // pred_region
      _
    $region25: #{gan_image_forward.1} parent=1 // pred_fallthru
      _
    // Predicated region
    $region26: #{gan_image_forward.1} parent=1 // pred_check
      _
    $region27: #{gan_image_forward.1} parent=1 // pred_check_branch
      %127 = sbr.rel (0) target = $region29
    $region28: #{gan_image_forward.1} parent=1 // pred_region
      _
    $region29: #{gan_image_forward.1} parent=1 // pred_fallthru
      _
    %128 = vsyncpa [#allocation3], 1
    %129 = vsyncpa [#allocation5], 1

</llo_original>
